<compile_context>
chip_gen: v7x
topology: tpu7x:2x2x1
jax: 0.10.0
libtpu: 0.0.40
codegen_flags: <defaults>
</compile_context>

<pallas_src>
import jax
import jax.numpy as jnp
from jax.experimental import pallas as pl
from jax.experimental.pallas import tpu as pltpu


def _residual_linear_kernel(x_ref, w_ref, b_ref, o_ref):
    # x_ref: [TM, Hd]   w_ref: [Hd, Hd] (VMEM-resident)   b_ref: [1, Hd]   o_ref: [TM, Hd]
    x = x_ref[...]
    # MXU matmul with f32 accumulation.
    y = jnp.dot(x, w_ref[...], preferred_element_type=jnp.float32)
    # Fused epilogue: bias onto the f32 accumulator, then residual; narrow only on store.
    o_ref[...] = (y + b_ref[...] + x).astype(o_ref.dtype)


def residual_linear(x, w, b, *, tm_max=512):
    """Residual with fnc = Linear(H->H):  (x @ W + b) + x, fused in one Pallas kernel.

    x: (B, S, H)   w: (H, H)   b: (H,)
    """
    B, S, H = x.shape
    T = B * S
    dtype = x.dtype

    # ---- lane-density: fold F tokens per row so the last dim is a multiple of 128.
    F = 1
    if H < 128 and (128 % H == 0) and (T % (128 // H) == 0):
        F = 128 // H
    Hd = F * H          # lane (last) dim seen by the kernel
    Tr = T // F         # rows seen by the kernel

    x2d = x.reshape(Tr, Hd)                     # row r holds tokens [r*F, ..., r*F + F - 1]
    if F > 1:
        w_k = jnp.kron(jnp.eye(F, dtype=w.dtype), w)   # block-diagonal (Hd, Hd)
        b_k = jnp.tile(b, F).reshape(1, Hd)
    else:
        w_k = w
        b_k = b.reshape(1, H)

    # ---- row tiling: stream token tiles, keep W/b resident across the grid.
    if Tr <= tm_max:
        TM, grid = Tr, (1,)                     # block == full array dims -> always legal
    else:
        TM, grid = tm_max, (pl.cdiv(Tr, tm_max),)   # TM multiple of 8; remainder padded

    # VMEM budget: double-buffered x/out tiles + resident W + bias (f32 upper bound).
    est = 4 * (2 * TM * Hd + 2 * TM * Hd + 2 * Hd * Hd + 2 * Hd)
    vmem_limit = int(min(max(2 * est, 8 << 20), 64 << 20))

    out2d = pl.pallas_call(
        _residual_linear_kernel,
        out_shape=jax.ShapeDtypeStruct((Tr, Hd), dtype),
        grid=grid,
        in_specs=[
            pl.BlockSpec((TM, Hd), lambda i: (i, 0)),   # x: streamed over token tiles
            pl.BlockSpec((Hd, Hd), lambda i: (0, 0)),   # W: resident in VMEM
            pl.BlockSpec((1, Hd),  lambda i: (0, 0)),   # b: resident in VMEM
        ],
        out_specs=pl.BlockSpec((TM, Hd), lambda i: (i, 0)),
        input_output_aliases={0: 0},                    # output reuses x2d's HBM buffer
        compiler_params=pltpu.CompilerParams(
            dimension_semantics=("parallel",),          # shard token axis across TCs
            vmem_limit_bytes=vmem_limit,
        ),
    )(x2d, w_k, b_k)

    return out2d.reshape(B, S, H)


if __name__ == "__main__":
    # Small shapes implied by the module usage: batch=2, seq=8, hidden=32.
    B, S, H = 2, 8, 32
    key = jax.random.PRNGKey(0)
    kx, kw, kb = jax.random.split(key, 3)

    x = jax.random.normal(kx, (B, S, H), dtype=jnp.float32)
    # Deterministic synthetic parameters for the wrapped fnc (Linear H->H).
    w = jax.random.normal(kw, (H, H), dtype=jnp.float32) * (1.0 / jnp.sqrt(H))
    b = jax.random.normal(kb, (H,), dtype=jnp.float32) * 0.01

    # Reference (plain JAX) computed and materialized first — the kernel may alias
    # x's buffer via input_output_aliases.  Residual semantics: fnc(x) + x.
    ref = jnp.einsum("bsh,hk->bsk", x, w) + b + x
    ref = jax.block_until_ready(ref)

    out = jax.jit(residual_linear)(x, w, b)
    out = jax.block_until_ready(out)

    assert out.shape == ref.shape
    assert jnp.allclose(out, ref, atol=1e-4, rtol=1e-4), "mismatch vs reference"
    print("KERNEL_OK")
</pallas_src>

<mosaic_0001>
module attributes {stable_mosaic.version = 11 : i64} {
  func.func @_residual_linear_kernel(%arg0: i32, %arg1: memref<4x128xf32, #tpu.memory_space<vmem>>, %arg2: memref<128x128xf32, #tpu.memory_space<vmem>>, %arg3: memref<1x128xf32, #tpu.memory_space<vmem>>, %arg4: memref<4x128xf32, #tpu.memory_space<vmem>>) attributes {dimension_semantics = [#tpu.dimension_semantics<parallel>], iteration_bounds = array<i64: 1>, scalar_prefetch = 0 : i64, scratch_operands = 0 : i64, tpu.core_type = #tpu.core_type<tc>, window_params = [{transform_indices = @transform_0, window_bounds = array<i64: 4, 128>}, {pipeline_mode = #tpu.pipeline_mode<synchronous>, transform_indices = @transform_1, window_bounds = array<i64: 128, 128>}, {pipeline_mode = #tpu.pipeline_mode<synchronous>, transform_indices = @transform_2, window_bounds = array<i64: 1, 128>}, {transform_indices = @transform_3, window_bounds = array<i64: 4, 128>}]} {
    %c0 = arith.constant 0 : index
    %c0_0 = arith.constant 0 : index
    %0 = vector.load %arg1[%c0, %c0_0] : memref<4x128xf32, #tpu.memory_space<vmem>>, vector<4x128xf32>
    %c0_1 = arith.constant 0 : index
    %c0_2 = arith.constant 0 : index
    %1 = vector.load %arg2[%c0_1, %c0_2] : memref<128x128xf32, #tpu.memory_space<vmem>>, vector<128x128xf32>
    %cst = arith.constant dense<0.000000e+00> : vector<4x128xf32>
    %2 = tpu.matmul %0, %1, %cst {dimension_numbers = #tpu.dot_dimension_numbers<[1], [0], [0], [1], [0, 0, 1, 1], [], []>} : vector<4x128xf32>, vector<128x128xf32>, vector<4x128xf32> -> vector<4x128xf32>
    %c0_3 = arith.constant 0 : index
    %c0_4 = arith.constant 0 : index
    %3 = vector.load %arg3[%c0_3, %c0_4] : memref<1x128xf32, #tpu.memory_space<vmem>>, vector<1x128xf32>
    %4 = vector.broadcast %3 : vector<1x128xf32> to vector<4x128xf32>
    %5 = arith.addf %2, %4 : vector<4x128xf32>
    %6 = arith.addf %5, %0 : vector<4x128xf32>
    %c0_5 = arith.constant 0 : index
    %c0_6 = arith.constant 0 : index
    %7 = vector.load %arg4[%c0_5, %c0_6] : memref<4x128xf32, #tpu.memory_space<vmem>>, vector<4x128xf32>
    tpu.vector_store %arg4[%c0_5, %c0_6], %6 {strides = array<i32>} : memref<4x128xf32, #tpu.memory_space<vmem>>, vector<4x128xf32>,
    return
  }
  func.func @transform_0(%arg0: i32) -> (i32, i32) {
    %c0_i32 = arith.constant 0 : i32
    %c0_i32_0 = arith.constant 0 : i32
    return %arg0, %c0_i32 : i32, i32
  }
  func.func @transform_1(%arg0: i32) -> (i32, i32) {
    %c0_i32 = arith.constant 0 : i32
    %c0_i32_0 = arith.constant 0 : i32
    %c0_i32_1 = arith.constant 0 : i32
    return %c0_i32, %c0_i32_0 : i32, i32
  }
  func.func @transform_2(%arg0: i32) -> (i32, i32) {
    %c0_i32 = arith.constant 0 : i32
    %c0_i32_0 = arith.constant 0 : i32
    %c0_i32_1 = arith.constant 0 : i32
    return %c0_i32, %c0_i32_0 : i32, i32
  }
  func.func @transform_3(%arg0: i32) -> (i32, i32) {
    %c0_i32 = arith.constant 0 : i32
    %c0_i32_0 = arith.constant 0 : i32
    return %arg0, %c0_i32 : i32, i32
  }
}

</mosaic_0001>

<llo_original>
// kernel: tile.8
$region0: #{tile.8}
  #allocation0 [shape = 's32[1]{0}', space=sflag, size = 0x4, scoped, tag = 'scoped memory for tile.8']
  %s0 = inlined_call_operand.vmem [shape: f32[32], index: 0, kind: input, shape index: {}]
  %s1 = inlined_call_operand.vmem [shape: f32[4,32], index: 1, kind: output, shape index: {}]
  // Predicated region
  $region2: #{tile.8} parent=0 // pred_check
    _
  $region3: #{tile.8} parent=0 // pred_check_branch
    %3 = sbr.rel (0) target = $region5
  $region4: #{tile.8} parent=0 // pred_region
    _
  $region5: #{tile.8} parent=0 // pred_fallthru
    _
  %v4 = vld [vmem:[%s0] ss:$0 sm:$0xff]
  %5 = vst [vmem:[%s1] sm:$0xf] %v4

// kernel: tile.9
$region0: #{tile.9}
  %s0 = inlined_call_operand.vmem [shape: f32[4,32], index: 0, kind: input, shape index: {}]
  %s1 = inlined_call_operand.vmem [shape: f32[1,128], index: 1, kind: output, shape index: {}]
  $region1: #{tile.9} parent=0
    #allocation0 [shape = 'u8[4096]{0}', space=vmem, size = 0x1000, scoped, tag = 'scoped mem for output reshape']
    #allocation1 [shape = 'u8[4096]{0}', space=vmem, size = 0x1000, scoped, tag = 'scoped mem for input reshape']
    %s3 = sshllo.u32 0, 4
    %v4 = vld [vmem:[%s0] sm:%s3]
    %5 = vst [vmem:[#allocation1] sm:%s3] %v4
    %v6 = vld [vmem:[#allocation1] sm:$0x1]
    %vm7 = vcmask 261120
    %8 = vst.msk [vmem:[#allocation0] sm:$0x1] %vm7, %v6
    %s9 = scalar_lea.vmem [#allocation1], 3
    %v10 = vld [vmem:[%s9] sm:$0x1]
    %11 = vrot.lane.b32.xlu0 %v10, 96
    %v12 = vpop.permute.xlu0 %11
    %vm13 = vcmask 1048320
    %14 = vst.msk [vmem:[#allocation0] sm:$0x1] %vm13, %v12
    %s15 = scalar_lea.vmem [#allocation1], 2
    %v16 = vld [vmem:[%s15] sm:$0x1]
    %17 = vrot.lane.b32.xlu0 %v16, 64
    %v18 = vpop.permute.xlu0 %17
    %vm19 = vcmask 785920
    %20 = vst.msk [vmem:[#allocation0] sm:$0x1] %vm19, %v18
    %s21 = scalar_lea.vmem [#allocation1], 1
    %v22 = vld [vmem:[%s21] sm:$0x1]
    %23 = vrot.lane.b32.xlu0 %v22, 32
    %v24 = vpop.permute.xlu0 %23
    %vm25 = vcmask 523520
    %26 = vst.msk [vmem:[#allocation0] sm:$0x1] %vm25, %v24
    %s28 = sshllo.u32 0, 1
    %v30 = vld [vmem:[#allocation0] sm:%s28]
    %s31 = sshllo.u32 0, 1
    %32 = vst [vmem:[%s1] sm:%s31] %v30

// kernel: residual_linear.1
$region0: #{residual_linear.1}
  #allocation0 [shape = 'u32[]', space=smem, size = 0x4, offset = 0x4, fixed_abs, tag = 'smem constant byte address 0x4 - core index']
  #allocation1 [shape = 'u32[144,128]{1,0:T(1,128)}', space=vmem, size = 0x12000, scoped, tag = 'internal scratch']
  %s0 = inlined_call_operand.vmem [shape: f32[4,128], index: 0, kind: input, shape index: {}, may-alias: {0,3}]
  %s1 = inlined_call_operand.vmem [shape: f32[128,128], index: 1, kind: input, shape index: {}]
  %s2 = inlined_call_operand.vmem [shape: f32[1,128], index: 2, kind: input, shape index: {}]
  %s3 = inlined_call_operand.vmem [shape: f32[4,128], index: 3, kind: output, shape index: {}, may-alias: {0,3}]
  %s4 = sld [smem:[#allocation0]]
  $region22: #{residual_linear.1} parent=0
    _
  %s6 = ssub.s32 1, %s4
  %s7 = scalar_select 0, %s6, %s4
  // Predicated region
  $region2: #{residual_linear.1} parent=0 // pred_check
    _
  $region3: #{residual_linear.1} parent=0 // pred_check_branch
    %9 = sbr.rel (0) target = $region5
  $region4: #{residual_linear.1} parent=0 // pred_region
    _
  $region5: #{residual_linear.1} parent=0 // pred_fallthru
    _
  // Predicated region
  $region6: #{residual_linear.1} parent=0 // pred_check
    _
  $region7: #{residual_linear.1} parent=0 // pred_check_branch
    %11 = sbr.rel (0) target = $region9
  $region8: #{residual_linear.1} parent=0 // pred_region
    _
  $region9: #{residual_linear.1} parent=0 // pred_fallthru
    _
  // Predicated region
  $region10: #{residual_linear.1} parent=0 // pred_check
    _
  $region11: #{residual_linear.1} parent=0 // pred_check_branch
    %13 = sbr.rel (0) target = $region13
  $region12: #{residual_linear.1} parent=0 // pred_region
    _
  $region13: #{residual_linear.1} parent=0 // pred_fallthru
    _
  %v14 = vld [vmem:[%s0] sm:$0xf]
  %v15 = vld [vmem:[%s1] sm:$0xff]
  %v16 = vld [vmem:[%s1 + $0x8] sm:$0xff]
  %v17 = vld [vmem:[%s1 + $0x10] sm:$0xff]
  %v18 = vld [vmem:[%s1 + $0x18] sm:$0xff]
  %v19 = vld [vmem:[%s1 + $0x20] sm:$0xff]
  %v20 = vld [vmem:[%s1 + $0x28] sm:$0xff]
  %v21 = vld [vmem:[%s1 + $0x30] sm:$0xff]
  %v22 = vld [vmem:[%s1 + $0x38] sm:$0xff]
  %v23 = vld [vmem:[%s1 + $0x40] sm:$0xff]
  %v24 = vld [vmem:[%s1 + $0x48] sm:$0xff]
  %v25 = vld [vmem:[%s1 + $0x50] sm:$0xff]
  %v26 = vld [vmem:[%s1 + $0x58] sm:$0xff]
  %v27 = vld [vmem:[%s1 + $0x60] sm:$0xff]
  %v28 = vld [vmem:[%s1 + $0x68] sm:$0xff]
  %v29 = vld [vmem:[%s1 + $0x70] sm:$0xff]
  %v30 = vld [vmem:[%s1 + $0x78] sm:$0xff]
  %v31 = vld [vmem:[%s2] sm:$0x1]
  %v33 = vlaneseq
  %v34 = vshrl.u32 %v33, 7
  %v35 = vsub.s32 0, %v34
  %v36 = vrot.slane %v31, %v35
  %38 = vmatprep.subr.mxu0 0.0
  %39 = vmatpush1.msra.mxu0 %v15
  %40 = vmatprep.subr.mxu0 0.0
  %41 = vmatpush1.msra.mxu0 %v16
  %42 = vmatprep.subr.mxu0 0.0
  %43 = vmatpush1.msra.mxu0 %v17
  %44 = vmatprep.subr.mxu0 0.0
  %45 = vmatpush1.msra.mxu0 %v18
  %46 = vmatprep.subr.mxu0 0.0
  %47 = vmatpush1.msra.mxu0 %v19
  %48 = vmatprep.subr.mxu0 0.0
  %49 = vmatpush1.msra.mxu0 %v20
  %50 = vmatprep.subr.mxu0 0.0
  %51 = vmatpush1.msra.mxu0 %v21
  %52 = vmatprep.subr.mxu0 0.0
  %53 = vmatpush1.msra.mxu0 %v22
  %54 = vmatprep.subr.mxu0 0.0
  %55 = vmatpush1.msra.mxu0 %v23
  %56 = vmatprep.subr.mxu0 0.0
  %57 = vmatpush1.msra.mxu0 %v24
  %58 = vmatprep.subr.mxu0 0.0
  %59 = vmatpush1.msra.mxu0 %v25
  %60 = vmatprep.subr.mxu0 0.0
  %61 = vmatpush1.msra.mxu0 %v26
  %62 = vmatprep.subr.mxu0 0.0
  %63 = vmatpush1.msra.mxu0 %v27
  %64 = vmatprep.subr.mxu0 0.0
  %65 = vmatpush1.msra.mxu0 %v28
  %66 = vmatprep.subr.mxu0 0.0
  %67 = vmatpush1.msra.mxu0 %v29
  %68 = vmatprep.subr.mxu0 0.0
  %69 = vmatpush1.msra.mxu0 %v30
  %70 = vmatprep.subr.mxu0 0.0
  %71 = vmatpush1.msra.mxu0 0.0
  %72 = vmatprep.subr.mxu0 0.0
  %73 = vmatpush1.msra.mxu0 0.0
  %74 = vmatprep.subr.mxu0 0.0
  %75 = vmatpush1.msra.mxu0 0.0
  %76 = vmatprep.subr.mxu0 0.0
  %77 = vmatpush1.msra.mxu0 0.0
  %78 = vmatprep.subr.mxu0 0.0
  %79 = vmatpush1.msra.mxu0 0.0
  %80 = vmatprep.subr.mxu0 0.0
  %81 = vmatpush1.msra.mxu0 0.0
  %82 = vmatprep.subr.mxu0 0.0
  %83 = vmatpush1.msra.mxu0 0.0
  %84 = vmatprep.subr.mxu0 0.0
  %85 = vmatpush1.msra.mxu0 0.0
  %86 = vmatprep.subr.mxu0 0.0
  %87 = vmatpush1.msra.mxu0 0.0
  %88 = vmatprep.subr.mxu0 0.0
  %89 = vmatpush1.msra.mxu0 0.0
  %90 = vmatprep.subr.mxu0 0.0
  %91 = vmatpush1.msra.mxu0 0.0
  %92 = vmatprep.subr.mxu0 0.0
  %93 = vmatpush1.msra.mxu0 0.0
  %94 = vmatprep.subr.mxu0 0.0
  %95 = vmatpush1.msra.mxu0 0.0
  %96 = vmatprep.subr.mxu0 0.0
  %97 = vmatpush1.msra.mxu0 0.0
  %98 = vmatprep.subr.mxu0 0.0
  %99 = vmatpush1.msra.mxu0 0.0
  %100 = vmatprep.subr.mxu0 0.0
  %101 = vmatpush1.msra.mxu0 0.0
  %102 = vmatprep.mubr.f32.mxu0 0.0
  %103 = vmatmul.mubr.f32.gmra.mrb[0].mxu0 %v14
  %v104 = vpop.f32.mrb[0].mxu0
  %v105 = vadd.f32 %v36, %v104
  %v106 = vpop.f32.mrb[0].mxu0
  %107 = vdwg.mxu0
  %v108 = vadd.f32 %v105, %v14
  %109 = vst [vmem:[%s3] sm:$0xf] %v108
  // Predicated region
  $region14: #{residual_linear.1} parent=0 // pred_check
    _
  $region15: #{residual_linear.1} parent=0 // pred_check_branch
    %111 = sbr.rel (0) target = $region17
  $region16: #{residual_linear.1} parent=0 // pred_region
    _
  $region17: #{residual_linear.1} parent=0 // pred_fallthru
    _
  // Predicated region
  $region18: #{residual_linear.1} parent=0 // pred_check
    _
  $region19: #{residual_linear.1} parent=0 // pred_check_branch
    %113 = sbr.rel (0) target = $region21
  $region20: #{residual_linear.1} parent=0 // pred_region
    _
  $region21: #{residual_linear.1} parent=0 // pred_fallthru
    _

</llo_original>
